<compile_context>
chip_gen: v7x
topology: tpu7x:2x2x1
jax: 0.10.0
libtpu: 0.0.40
codegen_flags: <defaults>
</compile_context>

<pallas_src>
import functools

import jax
import jax.numpy as jnp
from jax.experimental import pallas as pl
from jax.experimental.pallas import tpu as pltpu


def nce_kernel(norm_term, inv_denom,
               x_ref,       # (TILE_N, E)  f32  token embeddings (pipelined)
               wt_ref,      # (TILE_N, E)  f32  decoder rows for targets (pipelined)
               side_ref,    # (TILE_N, 2)  f32  [bias[t]-log(k*Pn(t)), valid]
               bn_ref,      # (1, NR_PAD)  f32  bias[n]-log(k*Pn(n)); -1e30 padding
               wn_hbm,      # (E, NR_PAD)  f32  noise decoder rows (HBM, pl.ANY)
               o_ref,       # (1, 8, 128)  f32  per-split partial loss (broadcast)
               wn_vmem,     # (E, NR_PAD)  f32  VMEM copy of wn_hbm (single-buffered)
               sem,         # (1,) DMA semaphore
               acc_ref):    # (1, 1)       f32  running partial sum
    t = pl.program_id(1)
    nt = pl.num_programs(1)

    # Once per split: zero the accumulator and kick off the one-time copy of
    # the shared noise-weight slab (on a single-core chip the copy for the
    # second split is redundant but harmless).
    @pl.when(t == 0)
    def _():
        acc_ref[...] = jnp.zeros_like(acc_ref)
        pltpu.make_async_copy(wn_hbm, wn_vmem, sem.at[0]).start()

    x = x_ref[...]                                            # (TILE_N, E)
    side = side_ref[...]                                      # (TILE_N, 2)

    # ---- data term (independent of the noise slab -> computed before wait)
    # log(p_d / (p_d + k*Pn(t))) = -softplus(norm - (logit - log(k*Pn(t))))
    shifted_d = jnp.sum(x * wt_ref[...], axis=-1, keepdims=True) + side[:, 0:1]
    z_d = norm_term - shifted_d
    rnn_loss = -(jnp.maximum(z_d, 0.0) + jnp.log1p(jnp.exp(-jnp.abs(z_d))))

    @pl.when(t == 0)
    def _():
        pltpu.make_async_copy(wn_hbm, wn_vmem, sem.at[0]).wait()

    # ---- noise term: shared noise set -> one MXU matmul, lane-dense columns.
    # log(k*Pn / (p + k*Pn)) = -softplus((logit - log(k*Pn)) - norm); padded
    # columns carry a -1e30 folded bias and contribute exactly 0.
    shifted_n = jnp.dot(x, wn_vmem[...],
                        preferred_element_type=jnp.float32) + bn_ref[...]
    z_n = shifted_n - norm_term
    noise_loss = -jnp.sum(
        jnp.maximum(z_n, 0.0) + jnp.log1p(jnp.exp(-jnp.abs(z_n))),
        axis=-1, keepdims=True)

    valid = side[:, 1:2]
    acc_ref[...] += jnp.sum(valid * (rnn_loss + noise_loss),
                            axis=0, keepdims=True)

    @pl.when(t == nt - 1)
    def _():
        val = (-acc_ref[...] * jnp.float32(inv_denom)).reshape(1, 1, 1)
        o_ref[...] = jnp.broadcast_to(val, o_ref.shape)


def _vmem_bytes(tile_n, e, nr_pad):
    """Rough per-kernel VMEM footprint."""
    return (2 * tile_n * e * 4          # x tile (double-buffered)
            + 2 * tile_n * e * 4        # gathered target rows (double-buffered)
            + 2 * tile_n * 2 * 4        # sideband
            + 2 * 8 * nr_pad * 4        # folded noise bias (sublane padded)
            + e * nr_pad * 4            # resident noise weights (scratch, 1 copy)
            + 4 * tile_n * nr_pad * 4   # noise-chain elementwise temporaries
            + 2 * tile_n * e * 4        # data-term temporaries
            + 8 * 128 * 4)              # output block


def _pick_tile_n(n, e, nr_pad, num_splits, cap=1024, budget_bytes=20 << 20):
    """Largest multiple of 8 <= cap fitting the VMEM budget (at least 8)."""
    per_split = -(-n // num_splits)
    t = min(cap, max(8, -(-per_split // 8) * 8))
    t -= t % 8
    while t > 8 and _vmem_bytes(t, e, nr_pad) > budget_bytes:
        t -= 8
    return max(t, 8)


def nce_loss(x, target, noise_samples, weight, bias, noise,
             noise_ratio=10, norm_term=9, size_average=True,
             tile_n=None, num_splits=2):
    N, E = x.shape
    Nr = noise_samples.shape[0]
    k = float(noise_ratio)

    x = x.astype(jnp.float32)
    weight = weight.astype(jnp.float32)
    bias = bias.astype(jnp.float32)
    noise = noise.astype(jnp.float32)
    target = target.astype(jnp.int32)

    # Minimal lane-dense padding of the noise dimension.
    nr_pad = max(128, ((Nr + 127) // 128) * 128)

    if tile_n is None:
        tile_n = _pick_tile_n(N, E, nr_pad, num_splits)
    tile_n = max(8, (tile_n // 8) * 8)

    chunk = tile_n * num_splits
    n_pad = ((N + chunk - 1) // chunk) * chunk
    pad = n_pad - N
    tiles_per_split = n_pad // chunk

    # Decoder-row gather for targets done wrapper-side (one large pipelined
    # DMA per tile).  For very large V*E a VMEM-resident-weight variant with
    # in-kernel row loads would be the alternative per the review.
    wt = weight[target]                                       # (N, E)

    # Per-token sideband: [bias[t] - log(k*Pn(t)), valid-row flag].
    pn_t = jnp.maximum(noise[target], jnp.float32(1e-30))
    side = jnp.stack([bias[target] - jnp.log(k * pn_t),
                      jnp.ones((N,), jnp.float32)], axis=1)   # (N, 2)

    if pad:
        x = jnp.concatenate([x, jnp.zeros((pad, E), jnp.float32)], axis=0)
        wt = jnp.concatenate([wt, jnp.zeros((pad, E), jnp.float32)], axis=0)
        side = jnp.concatenate([side, jnp.zeros((pad, 2), jnp.float32)], axis=0)

    # Shared noise slabs (lane-dense; padded columns contribute exactly 0).
    pn_n = jnp.maximum(noise[noise_samples], jnp.float32(1e-30))
    wnT = jnp.zeros((E, nr_pad), jnp.float32).at[:, :Nr].set(
        jnp.transpose(weight[noise_samples]))                 # (E, NR_PAD)
    bn = jnp.full((1, nr_pad), -1e30, jnp.float32).at[0, :Nr].set(
        bias[noise_samples] - jnp.log(k * pn_n))              # (1, NR_PAD)

    denom = float(N) if size_average else 1.0
    kernel = functools.partial(nce_kernel, float(norm_term), 1.0 / denom)

    vmem_limit = int(min(max(2 * _vmem_bytes(tile_n, E, nr_pad), 16 << 20),
                         48 << 20))

    out = pl.pallas_call(
        kernel,
        out_shape=jax.ShapeDtypeStruct((num_splits, 8, 128), jnp.float32),
        grid_spec=pltpu.PrefetchScalarGridSpec(
            num_scalar_prefetch=0,
            grid=(num_splits, tiles_per_split),
            in_specs=[
                pl.BlockSpec((tile_n, E),
                             lambda c, t: (c * tiles_per_split + t, 0)),
                pl.BlockSpec((tile_n, E),
                             lambda c, t: (c * tiles_per_split + t, 0)),
                pl.BlockSpec((tile_n, 2),
                             lambda c, t: (c * tiles_per_split + t, 0)),
                pl.BlockSpec((1, nr_pad), lambda c, t: (0, 0)),
                pl.BlockSpec(memory_space=pl.ANY),            # noise weights, HBM
            ],
            out_specs=pl.BlockSpec((1, 8, 128), lambda c, t: (c, 0, 0)),
            scratch_shapes=[
                pltpu.VMEM((E, nr_pad), jnp.float32),          # resident noise weights
                pltpu.SemaphoreType.DMA((1,)),
                pltpu.VMEM((1, 1), jnp.float32),               # partial-loss accumulator
            ],
        ),
        compiler_params=pltpu.CompilerParams(
            dimension_semantics=("parallel", "arbitrary"),
            vmem_limit_bytes=vmem_limit),
    )(x, wt, side, bn, wnT)

    return jnp.sum(out[:, 0, 0])


def nce_loss_ref(x, target, noise_samples, weight, bias, noise,
                 noise_ratio=10, norm_term=9):
    """Pure-JAX reference mirroring the PyTorch training branch."""
    N = x.shape[0]
    Nr = noise_samples.shape[0]
    idx = jnp.concatenate(
        [target[:, None], jnp.broadcast_to(noise_samples[None, :], (N, Nr))],
        axis=1)
    w = weight[idx]                                    # (N, 1+Nr, E)
    b = bias[idx]                                      # (N, 1+Nr)
    logits = jnp.einsum("ne,nke->nk", x, w) + b        # baddbmm
    probs = jnp.exp(logits - norm_term)
    data_prob = probs[:, 0]
    noise_in_data = probs[:, 1:]
    noise_probs = noise[noise_samples][None, :]
    rnn_loss = jnp.log(data_prob / (data_prob + noise_ratio * noise[target]))
    noise_loss = jnp.sum(
        jnp.log(noise_ratio * noise_probs
                / (noise_in_data + noise_ratio * noise_probs)),
        axis=1)
    return -jnp.sum(rnn_loss + noise_loss) / N


if __name__ == "__main__":
    key = jax.random.PRNGKey(0)
    N, E, V = 36, 128, 512          # tokens, embedding size, vocab size
    noise_ratio, norm_term = 10, 9

    k_x, k_w, k_t, k_n, k_p = jax.random.split(key, 5)
    x = jax.random.normal(k_x, (N, E), jnp.float32)
    # IndexLinear.reset_parameters: weight ~ U(-0.1, 0.1), bias = 0
    weight = jax.random.uniform(k_w, (V, E), jnp.float32, -0.1, 0.1)
    bias = jnp.zeros((V,), jnp.float32)
    target = jax.random.randint(k_t, (N,), 0, V)
    # TODO(synk): AliasMethod.draw is host-side NumPy RNG; replaced by a
    # deterministic jax.random index draw (same noise set shared across the
    # batch, matching the .unsqueeze(0).repeat(length, 1) semantics).
    noise_samples = jax.random.randint(k_n, (noise_ratio,), 0, V)
    noise_raw = jax.random.uniform(k_p, (V,), jnp.float32, 0.1, 1.0)
    noise = noise_raw / jnp.sum(noise_raw)   # noise distribution over vocab

    # tile_n=8, num_splits=2, N=36 -> grid (2, 3) with 12 masked pad rows:
    # exercises the parallel split axis, multi-step accumulation and masking.
    loss = nce_loss(x, target, noise_samples, weight, bias, noise,
                    noise_ratio=noise_ratio, norm_term=norm_term,
                    tile_n=8, num_splits=2)
    loss = jax.block_until_ready(loss)

    ref = nce_loss_ref(x, target, noise_samples, weight, bias, noise,
                       noise_ratio=noise_ratio, norm_term=norm_term)
    assert jnp.allclose(loss, ref, rtol=1e-4, atol=1e-5), (loss, ref)
    print("KERNEL_OK")
</pallas_src>

<mosaic_0001>
module attributes {stable_mosaic.version = 11 : i64} {
  func.func @nce_kernel(%arg0: i32, %arg1: i32, %arg2: memref<8x128xf32, #tpu.memory_space<vmem>>, %arg3: memref<8x128xf32, #tpu.memory_space<vmem>>, %arg4: memref<8x2xf32, #tpu.memory_space<vmem>>, %arg5: memref<1x128xf32, #tpu.memory_space<vmem>>, %arg6: memref<128x128xf32, #tpu.memory_space<any>>, %arg7: memref<1x8x128xf32, #tpu.memory_space<vmem>>, %arg8: memref<128x128xf32, #tpu.memory_space<vmem>>, %arg9: memref<1x!tpu.dma_semaphore, #tpu.memory_space<semaphore_mem>>, %arg10: memref<1x1xf32, #tpu.memory_space<vmem>>) attributes {dimension_semantics = [#tpu.dimension_semantics<parallel>, #tpu.dimension_semantics<arbitrary>], iteration_bounds = array<i64: 2, 3>, scalar_prefetch = 0 : i64, scratch_operands = 3 : i64, tpu.core_type = #tpu.core_type<tc>, window_params = [{transform_indices = @transform_0, window_bounds = array<i64: 8, 128>}, {transform_indices = @transform_1, window_bounds = array<i64: 8, 128>}, {transform_indices = @transform_2, window_bounds = array<i64: 8, 2>}, {pipeline_mode = #tpu.pipeline_mode<synchronous>, transform_indices = @transform_3, window_bounds = array<i64: 1, 128>}, {}, {transform_indices = @transform_5, window_bounds = array<i64: 1, 8, 128>}]} {
    %c0_i32 = arith.constant 0 : i32
    %0 = arith.cmpi eq, %arg1, %c0_i32 : i32
    %1 = arith.extui %0 : i1 to i32
    %c0_i32_0 = arith.constant 0 : i32
    %2 = arith.cmpi ne, %1, %c0_i32_0 : i32
    scf.if %2 {
      %cst_28 = arith.constant 0.000000e+00 : f32
      %56 = vector.broadcast %cst_28 : f32 to vector<1x1xf32>
      %c0_29 = arith.constant 0 : index
      %c0_30 = arith.constant 0 : index
      %57 = vector.load %arg10[%c0_29, %c0_30] : memref<1x1xf32, #tpu.memory_space<vmem>>, vector<1x1xf32>
      tpu.vector_store %arg10[%c0_29, %c0_30], %56 {strides = array<i32>} : memref<1x1xf32, #tpu.memory_space<vmem>>, vector<1x1xf32>,
      %c0_i32_31 = arith.constant 0 : i32
      %58 = tpu.memref_slice %arg9[%c0_i32_31] : memref<1x!tpu.dma_semaphore, #tpu.memory_space<semaphore_mem>> -> memref<1x!tpu.dma_semaphore, #tpu.memory_space<semaphore_mem>>
      %59 = tpu.memref_squeeze %58 : memref<1x!tpu.dma_semaphore, #tpu.memory_space<semaphore_mem>> -> memref<!tpu.dma_semaphore, #tpu.memory_space<semaphore_mem>>
      tpu.enqueue_dma source(%arg6 : memref<128x128xf32, #tpu.memory_space<any>>) target(%arg8 : memref<128x128xf32, #tpu.memory_space<vmem>>) target_semaphore(%59 : memref<!tpu.dma_semaphore, #tpu.memory_space<semaphore_mem>>)
    } else {
    }
    %c0 = arith.constant 0 : index
    %c0_1 = arith.constant 0 : index
    %3 = vector.load %arg2[%c0, %c0_1] : memref<8x128xf32, #tpu.memory_space<vmem>>, vector<8x128xf32>
    %c0_2 = arith.constant 0 : index
    %c0_3 = arith.constant 0 : index
    %4 = vector.load %arg4[%c0_2, %c0_3] : memref<8x2xf32, #tpu.memory_space<vmem>>, vector<8x2xf32>
    %c0_4 = arith.constant 0 : index
    %c0_5 = arith.constant 0 : index
    %5 = vector.load %arg3[%c0_4, %c0_5] : memref<8x128xf32, #tpu.memory_space<vmem>>, vector<8x128xf32>
    %6 = arith.mulf %3, %5 : vector<8x128xf32>
    %cst = arith.constant dense<0.000000e+00> : vector<8xf32>
    %7 = vector.multi_reduction <add>, %6, %cst [1] : vector<8x128xf32> to vector<8xf32>
    %8 = vector.shape_cast %7 : vector<8xf32> to vector<8x1xf32>
    %9 = vector.extract_strided_slice %4 {offsets = [0, 0], sizes = [8, 1], strides = [1, 1]} : vector<8x2xf32> to vector<8x1xf32>
    %10 = arith.addf %8, %9 : vector<8x1xf32>
    %cst_6 = arith.constant 9.000000e+00 : f32
    %11 = vector.broadcast %cst_6 : f32 to vector<8x1xf32>
    %12 = arith.subf %11, %10 : vector<8x1xf32>
    %cst_7 = arith.constant 0.000000e+00 : f32
    %13 = vector.broadcast %cst_7 : f32 to vector<8x1xf32>
    %14 = arith.maximumf %12, %13 : vector<8x1xf32>
    %15 = math.absf %12 : vector<8x1xf32>
    %cst_8 = arith.constant 0.000000e+00 : f32
    %16 = vector.broadcast %cst_8 : f32 to vector<8x1xf32>
    %17 = arith.subf %16, %15 : vector<8x1xf32>
    %18 = math.exp %17 : vector<8x1xf32>
    %19 = math.log1p %18 : vector<8x1xf32>
    %20 = arith.addf %14, %19 : vector<8x1xf32>
    %cst_9 = arith.constant 0.000000e+00 : f32
    %21 = vector.broadcast %cst_9 : f32 to vector<8x1xf32>
    %22 = arith.subf %21, %20 : vector<8x1xf32>
    %c0_i32_10 = arith.constant 0 : i32
    %23 = arith.cmpi eq, %arg1, %c0_i32_10 : i32
    %24 = arith.extui %23 : i1 to i32
    %c0_i32_11 = arith.constant 0 : i32
    %25 = arith.cmpi ne, %24, %c0_i32_11 : i32
    scf.if %25 {
      %c0_i32_28 = arith.constant 0 : i32
      %56 = tpu.memref_slice %arg9[%c0_i32_28] : memref<1x!tpu.dma_semaphore, #tpu.memory_space<semaphore_mem>> -> memref<1x!tpu.dma_semaphore, #tpu.memory_space<semaphore_mem>>
      %57 = tpu.memref_squeeze %56 : memref<1x!tpu.dma_semaphore, #tpu.memory_space<semaphore_mem>> -> memref<!tpu.dma_semaphore, #tpu.memory_space<semaphore_mem>>
      tpu.wait_dma2 semaphore(%57 : memref<!tpu.dma_semaphore, #tpu.memory_space<semaphore_mem>>) src(%arg6 : memref<128x128xf32, #tpu.memory_space<any>>) dst(%arg8 : memref<128x128xf32, #tpu.memory_space<vmem>>)
    } else {
    }
    %c0_12 = arith.constant 0 : index
    %c0_13 = arith.constant 0 : index
    %26 = vector.load %arg8[%c0_12, %c0_13] : memref<128x128xf32, #tpu.memory_space<vmem>>, vector<128x128xf32>
    %cst_14 = arith.constant dense<0.000000e+00> : vector<8x128xf32>
    %27 = tpu.matmul %3, %26, %cst_14 {dimension_numbers = #tpu.dot_dimension_numbers<[1], [0], [0], [1], [0, 0, 1, 1], [], []>} : vector<8x128xf32>, vector<128x128xf32>, vector<8x128xf32> -> vector<8x128xf32>
    %c0_15 = arith.constant 0 : index
    %c0_16 = arith.constant 0 : index
    %28 = vector.load %arg5[%c0_15, %c0_16] : memref<1x128xf32, #tpu.memory_space<vmem>>, vector<1x128xf32>
    %29 = vector.broadcast %28 : vector<1x128xf32> to vector<8x128xf32>
    %30 = arith.addf %27, %29 : vector<8x128xf32>
    %cst_17 = arith.constant 9.000000e+00 : f32
    %31 = vector.broadcast %cst_17 : f32 to vector<8x128xf32>
    %32 = arith.subf %30, %31 : vector<8x128xf32>
    %cst_18 = arith.constant 0.000000e+00 : f32
    %33 = vector.broadcast %cst_18 : f32 to vector<8x128xf32>
    %34 = arith.maximumf %32, %33 : vector<8x128xf32>
    %35 = math.absf %32 : vector<8x128xf32>
    %cst_19 = arith.constant 0.000000e+00 : f32
    %36 = vector.broadcast %cst_19 : f32 to vector<8x128xf32>
    %37 = arith.subf %36, %35 : vector<8x128xf32>
    %38 = math.exp %37 : vector<8x128xf32>
    %39 = math.log1p %38 : vector<8x128xf32>
    %40 = arith.addf %34, %39 : vector<8x128xf32>
    %cst_20 = arith.constant dense<0.000000e+00> : vector<8xf32>
    %41 = vector.multi_reduction <add>, %40, %cst_20 [1] : vector<8x128xf32> to vector<8xf32>
    %42 = vector.shape_cast %41 : vector<8xf32> to vector<8x1xf32>
    %cst_21 = arith.constant 0.000000e+00 : f32
    %43 = vector.broadcast %cst_21 : f32 to vector<8x1xf32>
    %44 = arith.subf %43, %42 : vector<8x1xf32>
    %45 = vector.extract_strided_slice %4 {offsets = [0, 1], sizes = [8, 1], strides = [1, 1]} : vector<8x2xf32> to vector<8x1xf32>
    %c0_22 = arith.constant 0 : index
    %c0_23 = arith.constant 0 : index
    %46 = vector.load %arg10[%c0_22, %c0_23] : memref<1x1xf32, #tpu.memory_space<vmem>>, vector<1x1xf32>
    %47 = arith.addf %22, %44 : vector<8x1xf32>
    %48 = arith.mulf %45, %47 : vector<8x1xf32>
    %cst_24 = arith.constant dense<0.000000e+00> : vector<1xf32>
    %49 = vector.multi_reduction <add>, %48, %cst_24 [0] : vector<8x1xf32> to vector<1xf32>
    %50 = vector.shape_cast %49 : vector<1xf32> to vector<1x1xf32>
    %51 = arith.addf %46, %50 : vector<1x1xf32>
    %c0_25 = arith.constant 0 : index
    %c0_26 = arith.constant 0 : index
    %52 = vector.load %arg10[%c0_25, %c0_26] : memref<1x1xf32, #tpu.memory_space<vmem>>, vector<1x1xf32>
    tpu.vector_store %arg10[%c0_25, %c0_26], %51 {strides = array<i32>} : memref<1x1xf32, #tpu.memory_space<vmem>>, vector<1x1xf32>,
    %c2_i32 = arith.constant 2 : i32
    %53 = arith.cmpi eq, %arg1, %c2_i32 : i32
    %54 = arith.extui %53 : i1 to i32
    %c0_i32_27 = arith.constant 0 : i32
    %55 = arith.cmpi ne, %54, %c0_i32_27 : i32
    scf.if %55 {
      %c0_28 = arith.constant 0 : index
      %c0_29 = arith.constant 0 : index
      %56 = vector.load %arg10[%c0_28, %c0_29] : memref<1x1xf32, #tpu.memory_space<vmem>>, vector<1x1xf32>
      %cst_30 = arith.constant 0.000000e+00 : f32
      %57 = vector.broadcast %cst_30 : f32 to vector<1x1xf32>
      %58 = arith.subf %57, %56 : vector<1x1xf32>
      %cst_31 = arith.constant 0.027777778 : f32
      %59 = vector.broadcast %cst_31 : f32 to vector<1x1xf32>
      %60 = arith.mulf %58, %59 : vector<1x1xf32>
      %61 = vector.shape_cast %60 : vector<1x1xf32> to vector<1x1x1xf32>
      %62 = vector.shape_cast %61 : vector<1x1x1xf32> to vector<1x1x1xf32>
      %63 = vector.broadcast %62 : vector<1x1x1xf32> to vector<1x8x128xf32>
      %c0_32 = arith.constant 0 : index
      %c0_33 = arith.constant 0 : index
      %c0_34 = arith.constant 0 : index
      %64 = vector.load %arg7[%c0_32, %c0_33, %c0_34] : memref<1x8x128xf32, #tpu.memory_space<vmem>>, vector<1x8x128xf32>
      tpu.vector_store %arg7[%c0_32, %c0_33, %c0_34], %63 {strides = array<i32>} : memref<1x8x128xf32, #tpu.memory_space<vmem>>, vector<1x8x128xf32>,
    } else {
    }
    return
  }
  func.func @transform_0(%arg0: i32, %arg1: i32) -> (i32, i32) {
    %c3_i32 = arith.constant 3 : i32
    %0 = arith.muli %arg0, %c3_i32 : i32
    %1 = arith.addi %0, %arg1 : i32
    %c0_i32 = arith.constant 0 : i32
    %c0_i32_0 = arith.constant 0 : i32
    return %1, %c0_i32 : i32, i32
  }
  func.func @transform_1(%arg0: i32, %arg1: i32) -> (i32, i32) {
    %c3_i32 = arith.constant 3 : i32
    %0 = arith.muli %arg0, %c3_i32 : i32
    %1 = arith.addi %0, %arg1 : i32
    %c0_i32 = arith.constant 0 : i32
    %c0_i32_0 = arith.constant 0 : i32
    return %1, %c0_i32 : i32, i32
  }
  func.func @transform_2(%arg0: i32, %arg1: i32) -> (i32, i32) {
    %c3_i32 = arith.constant 3 : i32
    %0 = arith.muli %arg0, %c3_i32 : i32
    %1 = arith.addi %0, %arg1 : i32
    %c0_i32 = arith.constant 0 : i32
    %c0_i32_0 = arith.constant 0 : i32
    return %1, %c0_i32 : i32, i32
  }
  func.func @transform_3(%arg0: i32, %arg1: i32) -> (i32, i32) {
    %c0_i32 = arith.constant 0 : i32
    %c0_i32_0 = arith.constant 0 : i32
    %c0_i32_1 = arith.constant 0 : i32
    return %c0_i32, %c0_i32_0 : i32, i32
  }
  func.func @transform_5(%arg0: i32, %arg1: i32) -> (i32, i32, i32) {
    %c0_i32 = arith.constant 0 : i32
    %c0_i32_0 = arith.constant 0 : i32
    %c0_i32_1 = arith.constant 0 : i32
    return %arg0, %c0_i32, %c0_i32_0 : i32, i32, i32
  }
}

</mosaic_0001>

<llo_original>
// kernel: tpu_custom_call.1
$region0: #{tpu_custom_call.1}
  #allocation0 [shape = 'u32[]', space=smem, size = 0x4, offset = 0x4, fixed_abs, tag = 'smem constant byte address 0x4 - core index']
  #allocation1 [shape = 'u32[144,128]{1,0:T(1,128)}', space=vmem, size = 0x12000, scoped, tag = 'internal scratch']
  #allocation2 [shape = 'f32[128,128]{1,0:T(8,128)}', space=vmem, size = 0x10000, scoped, tag = 'scratch operand']
  #allocation3 [shape = 's32[1]{0}', space=sflag, size = 0x4, scoped, tag = 'scratch operand']
  #allocation4 [shape = 'f32[1,1]{1,0:T(1,128)}', space=vmem, size = 0x200, scoped, tag = 'scratch operand']
  #allocation9 [shape = 's32[]', space=sflag, size = 0x4, offset = 0, fixed_abs, tag = 'sflag constant byte address 0x0 - dummy sync flag']
  #allocation10 [shape = 's32[]', space=sflag, size = 0x4, offset = 0, fixed_abs, tag = 'sflag constant byte address 0x0 - dummy sync flag']
  #allocation11 [shape = 'u32[]', space=smem, size = 0x4, offset = 0x44, fixed_abs, tag = 'smem constant byte address 0x44 - assertion arg 0']
  #allocation12 [shape = 'u32[]', space=smem, size = 0x4, offset = 0x48, fixed_abs, tag = 'smem constant byte address 0x48 - assertion arg 1']
  %s0 = inlined_call_operand.vmem [shape: f32[48,128], index: 0, kind: input, shape index: {}]
  %s1 = inlined_call_operand.hbm [shape: f32[48,128], index: 1, kind: input, shape index: {}]
  %s2 = inlined_call_operand.vmem [shape: f32[48,2], index: 2, kind: input, shape index: {}]
  %s3 = inlined_call_operand.vmem [shape: f32[1,128], index: 3, kind: input, shape index: {}]
  %s4 = inlined_call_operand.hbm [shape: f32[128,128], index: 4, kind: input, shape index: {}]
  %s5 = inlined_call_operand.hbm [shape: f32[2,8,128], index: 5, kind: output, shape index: {}]
  %s6 = sld [smem:[#allocation0]]
  $region69: #{tpu_custom_call.1} parent=0
    _
  %s8 = ssub.s32 1, %s6
  %s9 = scalar_select 0, %s8, %s6
  $region1: #{tpu_custom_call.1} parent=0
    #allocation5 [shape = 'u8[8192]{0}', space=vmem, size = 0x2000, scoped, tag = 'input window, operand 1']
    #allocation6 [shape = 's32[2]{0}', space=sflag, size = 0x8, scoped, tag = 'scoped memory for tpu_custom_call.1']
    #allocation7 [shape = 's32[2]{0}', space=sflag, size = 0x8, scoped, tag = 'scoped memory for tpu_custom_call.1']
    #allocation8 [shape = 'u8[8192]{0}', space=vmem, size = 0x2000, scoped, tag = 'output window, operand 0']
    %10 = vsyncpa [#allocation6], 0
    %s11 = scalar_lea.sflag [#allocation6], 1
    %12 = vsyncpa %s11, 0
    %13 = vsyncpa [#allocation7], 0
    %s14 = scalar_lea.sflag [#allocation7], 1
    %15 = vsyncpa %s14, 0
    loop: start=0, step=1, limit=8
    $region2: #{tpu_custom_call.1} parent=1 // loop_pre_header
      _
    $region3: #{tpu_custom_call.1} parent=1 // loop_header
      %s17 = sphi 0, %s21
      %p18 = scmp.ge.s32.totalorder %s17, 8
      %s24 = sphi 0, %s36
      %s25 = sphi 0, %s32
      %s26 = sphi 0, %s24
      %s27 = sphi 0, %s25
      %s28 = sphi 0, %s26
      %s29 = sphi 0, %s27
      %s43 = sphi 0, %s45
      %s46 = sphi 0, %s43
      %s47 = sphi 0, %s46
      %s63 = sphi 0, %s47
      %s73 = sphi 0, %s75
      %s76 = sphi 0, %s73
      %s77 = sphi 0, %s76
      %s93 = sphi 0, %s77
      %s103 = sphi 0, %s105
      %s106 = sphi 0, %s103
      %s107 = sphi 0, %s106
      %s123 = sphi 0, %s107
      %s127 = sphi 0, %s127
      %s129 = sphi 0, %s127
      %s130 = sphi 0, %s129
      %s144 = sphi 0, %s130
      %s150 = sphi 0, %s152
      %s153 = sphi 0, %s150
      %s154 = sphi 0, %s153
      %s170 = sphi 0, %s154
    $region4: #{tpu_custom_call.1} parent=1 // loop_header_branch
      %20 = sbr.rel (%p18) target = $region8
    $region5: #{tpu_custom_call.1} parent=1 // loop_body
      %s22 = ssub.s32 %s17, 1
      %s23 = ssub.s32 %s17, 2
      %s30 = sadd.s32 1, %s25
      %p31 = scmp.ge.s32.totalorder %s30, 3
      %s32 = scalar_select %p31, 0, %s30
      %s33 = sadd.s32 1, %s24
      %s34 = scalar_select %p31, %s33, %s24
      %p35 = scmp.ge.s32.totalorder %s34, 2
      %s36 = scalar_select %p35, 0, %s34
      %s37 = smul.u32 %s24, 3
      %s38 = sadd.s32 %s37, %s25
      %s39 = smul.u32 %s36, 3
      %s40 = sadd.s32 %s39, %s32
      %s41 = ssub.s32 %s38, %s40
      %p42 = scmp.eq.s32.totalorder %s41, 0
      %s44 = sadd.s32 %s43, 1
      %s45 = scalar_select %p42, %s43, %s44
      %p48 = pneg %p42
      %p49 = scmp.eq.s32.totalorder %s17, 5
      %p50 = por %p48, %p49
      %p51 = scmp.ne.s32.totalorder %s43, %s46
      %p52 = scmp.eq.s32.totalorder %s17, 0
      %p53 = por %p51, %p52
      %p54 = scmp.ne.s32.totalorder %s43, %s46
      %p55 = scmp.eq.s32.totalorder %s22, 5
      %p56 = por %p54, %p55
      %p57 = scmp.ne.s32.totalorder %s46, %s47
      %p58 = scmp.eq.s32.totalorder %s22, 0
      %p59 = por %p57, %p58
      %p60 = scmp.ne.s32.totalorder %s46, %s47
      %p61 = scmp.eq.s32.totalorder %s23, 5
      %p62 = por %p60, %p61
      %p64 = scmp.ne.s32.totalorder %s47, %s63
      %p65 = scmp.eq.s32.totalorder %s23, 0
      %p66 = por %p64, %p65
      %s67 = smul.u32 %s24, 3
      %s68 = sadd.s32 %s67, %s25
      %s69 = smul.u32 %s36, 3
      %s70 = sadd.s32 %s69, %s32
      %s71 = ssub.s32 %s68, %s70
      %p72 = scmp.eq.s32.totalorder %s71, 0
      %s74 = sadd.s32 %s73, 1
      %s75 = scalar_select %p72, %s73, %s74
      %p78 = pneg %p72
      %p79 = scmp.eq.s32.totalorder %s17, 5
      %p80 = por %p78, %p79
      %p81 = scmp.ne.s32.totalorder %s73, %s76
      %p82 = scmp.eq.s32.totalorder %s17, 0
      %p83 = por %p81, %p82
      %p84 = scmp.ne.s32.totalorder %s73, %s76
      %p85 = scmp.eq.s32.totalorder %s22, 5
      %p86 = por %p84, %p85
      %p87 = scmp.ne.s32.totalorder %s76, %s77
      %p88 = scmp.eq.s32.totalorder %s22, 0
      %p89 = por %p87, %p88
      %p90 = scmp.ne.s32.totalorder %s76, %s77
      %p91 = scmp.eq.s32.totalorder %s23, 5
      %p92 = por %p90, %p91
      %p94 = scmp.ne.s32.totalorder %s77, %s93
      %p95 = scmp.eq.s32.totalorder %s23, 0
      %p96 = por %p94, %p95
      %s97 = smul.u32 %s24, 3
      %s98 = sadd.s32 %s97, %s25
      %s99 = smul.u32 %s36, 3
      %s100 = sadd.s32 %s99, %s32
      %s101 = ssub.s32 %s98, %s100
      %p102 = scmp.eq.s32.totalorder %s101, 0
      %s104 = sadd.s32 %s103, 1
      %s105 = scalar_select %p102, %s103, %s104
      %p108 = pneg %p102
      %p109 = scmp.eq.s32.totalorder %s17, 5
      %p110 = por %p108, %p109
      %p111 = scmp.ne.s32.totalorder %s103, %s106
      %p112 = scmp.eq.s32.totalorder %s17, 0
      %p113 = por %p111, %p112
      %p114 = scmp.ne.s32.totalorder %s103, %s106
      %p115 = scmp.eq.s32.totalorder %s22, 5
      %p116 = por %p114, %p115
      %p117 = scmp.ne.s32.totalorder %s106, %s107
      %p118 = scmp.eq.s32.totalorder %s22, 0
      %p119 = por %p117, %p118
      %p120 = scmp.ne.s32.totalorder %s106, %s107
      %p121 = scmp.eq.s32.totalorder %s23, 5
      %p122 = por %p120, %p121
      %p124 = scmp.ne.s32.totalorder %s107, %s123
      %p125 = scmp.eq.s32.totalorder %s23, 0
      %p126 = por %p124, %p125
      %s128 = sadd.s32 %s127, 1
      %p131 = scmp.eq.s32.totalorder %s17, 5
      %p132 = scmp.ne.s32.totalorder %s127, %s129
      %p133 = scmp.eq.s32.totalorder %s17, 0
      %p134 = por %p132, %p133
      %p135 = scmp.ne.s32.totalorder %s127, %s129
      %p136 = scmp.eq.s32.totalorder %s22, 5
      %p137 = por %p135, %p136
      %p138 = scmp.ne.s32.totalorder %s129, %s130
      %p139 = scmp.eq.s32.totalorder %s22, 0
      %p140 = por %p138, %p139
      %p141 = scmp.ne.s32.totalorder %s129, %s130
      %p142 = scmp.eq.s32.totalorder %s23, 5
      %p143 = por %p141, %p142
      %p145 = scmp.ne.s32.totalorder %s130, %s144
      %p146 = scmp.eq.s32.totalorder %s23, 0
      %p147 = por %p145, %p146
      %s148 = ssub.s32 %s24, %s36
      %p149 = scmp.eq.s32.totalorder %s148, 0
      %s151 = sadd.s32 %s150, 1
      %s152 = scalar_select %p149, %s150, %s151
      %p155 = pneg %p149
      %p156 = scmp.eq.s32.totalorder %s17, 5
      %p157 = por %p155, %p156
      %p158 = scmp.ne.s32.totalorder %s150, %s153
      %p159 = scmp.eq.s32.totalorder %s17, 0
      %p160 = por %p158, %p159
      %p161 = scmp.ne.s32.totalorder %s150, %s153
      %p162 = scmp.eq.s32.totalorder %s22, 5
      %p163 = por %p161, %p162
      %p164 = scmp.ne.s32.totalorder %s153, %s154
      %p165 = scmp.eq.s32.totalorder %s22, 0
      %p166 = por %p164, %p165
      %p167 = scmp.ne.s32.totalorder %s153, %s154
      %p168 = scmp.eq.s32.totalorder %s23, 5
      %p169 = por %p167, %p168
      %p171 = scmp.ne.s32.totalorder %s154, %s170
      %p172 = scmp.eq.s32.totalorder %s23, 0
      %p173 = por %p171, %p172
      %p174 = scmp.le.s32.totalorder 1, %s17
      %p175 = scmp.lt.s32.totalorder %s17, 7
      %p176 = pnand %p174, %p175
      %p177 = pneg %p176
      // Predicated region
      $region9: #{tpu_custom_call.1} parent=5 // pred_check
        _
      $region10: #{tpu_custom_call.1} parent=5 // pred_check_branch
        %179 = sbr.rel (%p176) target = $region12
      $region11: #{tpu_custom_call.1} parent=5 // pred_region
        %s180 = ssub.s32 %s17, 1
        // Predicated region
        $region13: #{tpu_custom_call.1} parent=11 // pred_check
          %p181 = pneg %p140
        $region14: #{tpu_custom_call.1} parent=11 // pred_check_branch
          %183 = sbr.rel (%p181) target = $region16
        $region15: #{tpu_custom_call.1} parent=11 // pred_region
          _
        $region16: #{tpu_custom_call.1} parent=11 // pred_fallthru
          _
      $region12: #{tpu_custom_call.1} parent=5 // pred_fallthru
        _
      %p184 = scmp.lt.s32.totalorder %s17, 6
      // Predicated region
      $region17: #{tpu_custom_call.1} parent=5 // pred_check
        %p185 = pneg %p184
      $region18: #{tpu_custom_call.1} parent=5 // pred_check_branch
        %187 = sbr.rel (%p185) target = $region20
      $region19: #{tpu_custom_call.1} parent=5 // pred_region
        // Predicated region
        $region21: #{tpu_custom_call.1} parent=19 // pred_check
          %p188 = pneg %p53
        $region22: #{tpu_custom_call.1} parent=19 // pred_check_branch
          %190 = sbr.rel (%p188) target = $region24
        $region23: #{tpu_custom_call.1} parent=19 // pred_region
          %s191 = smul.u32 %s24, 3
          %s192 = sadd.s32 %s191, %s25
          %p193 = scmp.lt.s32.totalorder %s192, 5
          %s194 = scalar_select %p193, %s192, 5
          %s195 = smul.addr %s194, 8
          %s196 = scalar_lea.vmem %s0, %s195
          %s197 = smul.u32 %s24, 3
          %s198 = sadd.s32 %s197, %s25
        $region24: #{tpu_custom_call.1} parent=19 // pred_fallthru
          _
        // Predicated region
        $region25: #{tpu_custom_call.1} parent=19 // pred_check
          %p199 = pneg %p83
        $region26: #{tpu_custom_call.1} parent=19 // pred_check_branch
          %201 = sbr.rel (%p199) target = $region28
        $region27: #{tpu_custom_call.1} parent=19 // pred_region
          %s202 = sand.u32 %s73, 1
          %s203 = scalar_lea.sflag [#allocation6], %s202
          %s204 = sand.u32 %s73, 1
          %s205 = smul.addr %s204, 8
          %s206 = scalar_lea.vmem [#allocation5], %s205
          %s207 = smul.u32 %s24, 3
          %s208 = sadd.s32 %s207, %s25
          %s210 = ssub.s32 128, 128
          %211 = vsyncadd %s203, %s210
          %s212 = smul.addr %s208, 128
          %s213 = scalar_lea.hbm %s1, %s212
          %s215 = sshll.u32 %s206, 4
          %s216 = int_to_ptr.vmem [resolvable:$true] %s215
          %218 = dma.hbm_to_vmem [thread:$0]  %s213, 128, %s216, %s203
        $region28: #{tpu_custom_call.1} parent=19 // pred_fallthru
          _
        // Predicated region
        $region29: #{tpu_custom_call.1} parent=19 // pred_check
          %p219 = pneg %p113
        $region30: #{tpu_custom_call.1} parent=19 // pred_check_branch
          %221 = sbr.rel (%p219) target = $region32
        $region31: #{tpu_custom_call.1} parent=19 // pred_region
          %s222 = smul.u32 %s24, 3
          %s223 = sadd.s32 %s222, %s25
          %p224 = scmp.lt.s32.totalorder %s223, 5
          %s225 = scalar_select %p224, %s223, 5
          %s226 = smul.addr %s225, 8
          %s227 = scalar_lea.vmem %s2, %s226
          %s228 = smul.u32 %s24, 3
          %s229 = sadd.s32 %s228, %s25
        $region32: #{tpu_custom_call.1} parent=19 // pred_fallthru
          _
      $region20: #{tpu_custom_call.1} parent=5 // pred_fallthru
        _
      %p230 = scmp.le.s32.totalorder 1, %s17
      %p231 = scmp.lt.s32.totalorder %s17, 7
      %p232 = pnand %p230, %p231
      %p233 = pneg %p232
      // Predicated region
      $region33: #{tpu_custom_call.1} parent=5 // pred_check
        _
      $region34: #{tpu_custom_call.1} parent=5 // pred_check_branch
        %235 = sbr.rel (%p232) target = $region36
      $region35: #{tpu_custom_call.1} parent=5 // pred_region
        %s236 = ssub.s32 %s17, 1
        %s237 = sand.u32 %s76, 1
        %s238 = scalar_lea.sflag [#allocation6], %s237
        %s239 = sand.u32 %s76, 1
        %s240 = smul.addr %s239, 8
        %s241 = scalar_lea.vmem [#allocation5], %s240
        // Predicated region
        $region37: #{tpu_custom_call.1} parent=35 // pred_check
          %p242 = pneg %p89
        $region38: #{tpu_custom_call.1} parent=35 // pred_check_branch
          %244 = sbr.rel (%p242) target = $region40
        $region39: #{tpu_custom_call.1} parent=35 // pred_region
          %245 = dma.done %s238, 128
        $region40: #{tpu_custom_call.1} parent=35 // pred_fallthru
          _
        %s246 = smul.u32 %s26, 3
        %s247 = sadd.s32 %s246, %s27
        %p248 = scmp.lt.s32.totalorder %s247, 5
        %s249 = scalar_select %p248, %s247, 5
        %s250 = smul.addr %s249, 8
        %s251 = scalar_lea.vmem %s0, %s250
        %p252 = pneg %p59
        %p253 = pneg %p56
        %s254 = sand.u32 %s76, 1
        %s255 = scalar_lea.sflag [#allocation6], %s254
        %s256 = sand.u32 %s76, 1
        %s257 = smul.addr %s256, 8
        %s258 = scalar_lea.vmem [#allocation5], %s257
        %p259 = pneg %p89
        %p260 = pneg %p86
        %s261 = smul.u32 %s26, 3
        %s262 = sadd.s32 %s261, %s27
        %p263 = scmp.lt.s32.totalorder %s262, 5
        %s264 = scalar_select %p263, %s262, 5
        %s265 = smul.addr %s264, 8
        %s266 = scalar_lea.vmem %s2, %s265
        %p267 = pneg %p119
        %p268 = pneg %p116
        %p269 = pneg %p140
        %p270 = pneg %p137
        %p271 = pneg %p166
        %p272 = pneg %p163
        %s273 = sand.u32 %s153, 1
        %s274 = scalar_lea.sflag [#allocation7], %s273
        %s275 = sand.u32 %s153, 1
        %s276 = smul.addr %s275, 8
        %s277 = scalar_lea.vmem [#allocation8], %s276
        %s278 = smul.u32 %s26, 3
        %s279 = sadd.s32 %s278, %s27
        %p280 = scmp.lt.s32.totalorder %s279, 5
        %s281 = scalar_select %p280, %s279, 5
        %s282 = smul.addr %s281, 8
        %s283 = scalar_lea.vmem %s0, %s282
        %s284 = smul.u32 %s26, 3
        %s285 = sadd.s32 %s284, %s27
        %s286 = smul.u32 %s26, 3
        %s287 = sadd.s32 %s286, %s27
        %s288 = smul.u32 %s26, 3
        %s289 = sadd.s32 %s288, %s27
        %p290 = scmp.lt.s32.totalorder %s289, 5
        %s291 = scalar_select %p290, %s289, 5
        %s292 = smul.addr %s291, 8
        %s293 = scalar_lea.vmem %s2, %s292
        %s294 = smul.u32 %s26, 3
        %s295 = sadd.s32 %s294, %s27
        %p296 = scmp.eq.s32.totalorder %s27, 0
        // Predicated region
        $region41: #{tpu_custom_call.1} parent=35 // pred_check
          %p297 = pneg %p296
        $region42: #{tpu_custom_call.1} parent=35 // pred_check_branch
          %299 = sbr.rel (%p297) target = $region44
        $region43: #{tpu_custom_call.1} parent=35 // pred_region
          %vm300 = vcmask 0
          %301 = vst.msk [vmem:[#allocation4] sm:$0x1] %vm300, 0.0
          // Predicated region
          $region45: #{tpu_custom_call.1} parent=43 // pred_check
            _
          $region46: #{tpu_custom_call.1} parent=43 // pred_check_branch
            %303 = sbr.rel target = $region48
          $region47: #{tpu_custom_call.1} parent=43 // pred_region
            %304 = sst [smem:[#allocation11]] [#allocation10]
            %305 = sst [smem:[#allocation12]] [#allocation9]
          $region48: #{tpu_custom_call.1} parent=43 // pred_fallthru
            _
          %307 = shalt.err (0)
          %s309 = sshll.u32 [#allocation2], 4
          %s310 = int_to_ptr.vmem [resolvable:$true] %s309
          %312 = dma.hbm_to_vmem [thread:$0]  %s4, 2048, %s310, [#allocation3]
        $region44: #{tpu_custom_call.1} parent=35 // pred_fallthru
          _
        %v313 = vld [vmem:[%s283] sm:$0xff]
        %v314 = vld [vmem:[%s293] sm:$0xff]
        %v315 = vld [vmem:[%s241] sm:$0xff]
        %v316 = vmul.f32 %v313, %v315
        %317 = vadd.xlane.f32.xlu0 %v316
        %v318 = vpop.xlane.xlu0 %317
        %v319 = vadd.f32 %v318, %v314
        %v320 = vsub.f32 9.0, %v319
        %v321 = vmax.f32 %v320, 0.0
        %v322 = vand.u32 2147483647, %v320
        %v323 = vsub.f32 0.0, %v322
        %v324 = vmul.f32 %v323, 1.442695
        %v325 = vpow.pop %v324
        %v326 = vadd.f32 %v325, 1.0
        %v327 = vlog2.pop %v326
        %v328 = vmul.f32 %v327, 0.6931472
        %v329 = vmul.f32 -0.5, %v325
        %v330 = vadd.f32 %v329, 1.0
        %v331 = vmul.f32 %v330, %v325
        %v332 = vand.u32 2147483647, %v325
        %vm333 = vcmp.lt.f32.partialorder %v332, 0.0004427343
        %v334 = vsel %vm333, %v331, %v328
        %v335 = vadd.f32 %v321, %v334
        %v336 = vsub.f32 0.0, %v335
        // Predicated region
        $region49: #{tpu_custom_call.1} parent=35 // pred_check
          %p337 = pneg %p296
        $region50: #{tpu_custom_call.1} parent=35 // pred_check_branch
          %339 = sbr.rel (%p337) target = $region52
        $region51: #{tpu_custom_call.1} parent=35 // pred_region
          %s340 = smul.u32 128, 1
          %s341 = sshll.u32 %s340, 4
          %342 = dma.done [#allocation3], %s341
        $region52: #{tpu_custom_call.1} parent=35 // pred_fallthru
          _
        %v343 = vld [vmem:[#allocation2] sm:$0xff]
        %v344 = vld [vmem:[#allocation2 + $0x8] sm:$0xff]
        %v345 = vld [vmem:[#allocation2 + $0x10] sm:$0xff]
        %v346 = vld [vmem:[#allocation2 + $0x18] sm:$0xff]
        %v347 = vld [vmem:[#allocation2 + $0x20] sm:$0xff]
        %v348 = vld [vmem:[#allocation2 + $0x28] sm:$0xff]
        %v349 = vld [vmem:[#allocation2 + $0x30] sm:$0xff]
        %v350 = vld [vmem:[#allocation2 + $0x38] sm:$0xff]
        %v351 = vld [vmem:[#allocation2 + $0x40] sm:$0xff]
        %v352 = vld [vmem:[#allocation2 + $0x48] sm:$0xff]
        %v353 = vld [vmem:[#allocation2 + $0x50] sm:$0xff]
        %v354 = vld [vmem:[#allocation2 + $0x58] sm:$0xff]
        %v355 = vld [vmem:[#allocation2 + $0x60] sm:$0xff]
        %v356 = vld [vmem:[#allocation2 + $0x68] sm:$0xff]
        %v357 = vld [vmem:[#allocation2 + $0x70] sm:$0xff]
        %v358 = vld [vmem:[#allocation2 + $0x78] sm:$0xff]
        %v359 = vld [vmem:[%s3] sm:$0x1]
        %v361 = vlaneseq
        %v362 = vshrl.u32 %v361, 7
        %v363 = vsub.s32 0, %v362
        %v364 = vrot.slane %v359, %v363
        %366 = vmatprep.subr.mxu0 0.0
        %367 = vmatpush1.msra.mxu0 %v343
        %368 = vmatprep.subr.mxu0 0.0
        %369 = vmatpush1.msra.mxu0 %v344
        %370 = vmatprep.subr.mxu0 0.0
        %371 = vmatpush1.msra.mxu0 %v345
        %372 = vmatprep.subr.mxu0 0.0
        %373 = vmatpush1.msra.mxu0 %v346
        %374 = vmatprep.subr.mxu0 0.0
        %375 = vmatpush1.msra.mxu0 %v347
        %376 = vmatprep.subr.mxu0 0.0
        %377 = vmatpush1.msra.mxu0 %v348
        %378 = vmatprep.subr.mxu0 0.0
        %379 = vmatpush1.msra.mxu0 %v349
        %380 = vmatprep.subr.mxu0 0.0
        %381 = vmatpush1.msra.mxu0 %v350
        %382 = vmatprep.subr.mxu0 0.0
        %383 = vmatpush1.msra.mxu0 %v351
        %384 = vmatprep.subr.mxu0 0.0
        %385 = vmatpush1.msra.mxu0 %v352
        %386 = vmatprep.subr.mxu0 0.0
        %387 = vmatpush1.msra.mxu0 %v353
        %388 = vmatprep.subr.mxu0 0.0
        %389 = vmatpush1.msra.mxu0 %v354
        %390 = vmatprep.subr.mxu0 0.0
        %391 = vmatpush1.msra.mxu0 %v355
        %392 = vmatprep.subr.mxu0 0.0
        %393 = vmatpush1.msra.mxu0 %v356
        %394 = vmatprep.subr.mxu0 0.0
        %395 = vmatpush1.msra.mxu0 %v357
        %396 = vmatprep.subr.mxu0 0.0
        %397 = vmatpush1.msra.mxu0 %v358
        %398 = vmatprep.subr.mxu0 0.0
        %399 = vmatpush1.msra.mxu0 0.0
        %400 = vmatprep.subr.mxu0 0.0
        %401 = vmatpush1.msra.mxu0 0.0
        %402 = vmatprep.subr.mxu0 0.0
        %403 = vmatpush1.msra.mxu0 0.0
        %404 = vmatprep.subr.mxu0 0.0
        %405 = vmatpush1.msra.mxu0 0.0
        %406 = vmatprep.subr.mxu0 0.0
        %407 = vmatpush1.msra.mxu0 0.0
        %408 = vmatprep.subr.mxu0 0.0
        %409 = vmatpush1.msra.mxu0 0.0
        %410 = vmatprep.subr.mxu0 0.0
        %411 = vmatpush1.msra.mxu0 0.0
        %412 = vmatprep.subr.mxu0 0.0
        %413 = vmatpush1.msra.mxu0 0.0
        %414 = vmatprep.subr.mxu0 0.0
        %415 = vmatpush1.msra.mxu0 0.0
        %416 = vmatprep.subr.mxu0 0.0
        %417 = vmatpush1.msra.mxu0 0.0
        %418 = vmatprep.subr.mxu0 0.0
        %419 = vmatpush1.msra.mxu0 0.0
        %420 = vmatprep.subr.mxu0 0.0
        %421 = vmatpush1.msra.mxu0 0.0
        %422 = vmatprep.subr.mxu0 0.0
        %423 = vmatpush1.msra.mxu0 0.0
        %424 = vmatprep.subr.mxu0 0.0
        %425 = vmatpush1.msra.mxu0 0.0
        %426 = vmatprep.subr.mxu0 0.0
        %427 = vmatpush1.msra.mxu0 0.0
        %428 = vmatprep.subr.mxu0 0.0
        %429 = vmatpush1.msra.mxu0 0.0
        %430 = vmatprep.mubr.f32.mxu0 0.0
        %431 = vmatmul.mubr.f32.gmra.mrb[0].mxu0 %v313
        %v432 = vpop.f32.mrb[0].mxu0
        %v433 = vadd.f32 %v364, %v432
        %v434 = vpop.f32.mrb[0].mxu0
        %435 = vdwg.mxu0
        %v436 = vsub.f32 %v433, 9.0
        %v437 = vmax.f32 %v436, 0.0
        %v438 = vand.u32 2147483647, %v436
        %v439 = vsub.f32 0.0, %v438
        %v440 = vmul.f32 %v439, 1.442695
        %v441 = vpow.pop %v440
        %v442 = vadd.f32 %v441, 1.0
        %v443 = vlog2.pop %v442
        %v444 = vmul.f32 %v443, 0.6931472
        %v445 = vmul.f32 -0.5, %v441
        %v446 = vadd.f32 %v445, 1.0
        %v447 = vmul.f32 %v446, %v441
        %v448 = vand.u32 2147483647, %v441
        %vm449 = vcmp.lt.f32.partialorder %v448, 0.0004427343
        %v450 = vsel %vm449, %v447, %v444
        %v451 = vadd.f32 %v437, %v450
        %452 = vadd.xlane.f32.xlu0 %v451
        %v453 = vpop.xlane.xlu0 %452
        %v454 = vsub.f32 0.0, %v453
        %v455 = vld [vmem:[#allocation4] sm:$0x1]
        %v456 = vadd.f32 %v336, %v454
        %458 = vrot.lane.b32.xlu0 %v456, 1
        %v459 = vpop.permute.xlu0 %458
        %v461 = vmul.f32 %v314, %v459
        %vm462 = vcmask 15368
        %v463 = vsel %vm462, %v461, 0.0
        %v464 = vrot.slane %v463, 4
        %v465 = vadd.f32 %v463, %v464
        %v466 = vrot.slane %v465, 2
        %v467 = vadd.f32 %v465, %v466
        %v468 = vrot.slane %v467, 1
        %v469 = vadd.f32 %v467, %v468
        %v472 = vunpack.c.l.s4 1966171168
        %v473 = vunpack.c.0.s8 %v472
        %v474 = vlaneseq
        %v475 = vshrl.u32 %v474, 7
        %v476 = vsub.s32 %v473, %v475
        %v477 = vrot.slane %v469, %v476
        %v479 = vunpack.c.l.s4 1966171168
        %v480 = vunpack.c.0.s8 %v479
        %v481 = vlaneseq
        %v482 = vshrl.u32 %v481, 7
        %v483 = vsub.s32 %v480, %v482
        %v484 = vrot.slane %v477, %v483
        %485 = vrot.lane.b32.xlu0 %v484, 127
        %v486 = vpop.permute.xlu0 %485
        %v488 = vadd.f32 %v455, %v486
        %vm489 = vcmask 0
        %490 = vst.msk [vmem:[#allocation4] sm:$0x1] %vm489, %v488
        %p491 = scmp.eq.s32.totalorder %s27, 2
        // Predicated region
        $region53: #{tpu_custom_call.1} parent=35 // pred_check
          %p492 = pneg %p491
        $region54: #{tpu_custom_call.1} parent=35 // pred_check_branch
          %494 = sbr.rel (%p492) target = $region56
        $region55: #{tpu_custom_call.1} parent=35 // pred_region
          %v495 = vld [vmem:[#allocation4] sm:$0x1]
          %v496 = vsub.f32 0.0, %v495
          %v497 = vmul.f32 %v496, 0.027777778
          %v499 = vlaneseq
          %v500 = vshrl.u32 %v499, 7
          %v501 = vsub.s32 0, %v500
          %v502 = vrot.slane %v497, %v501
          %503 = vset.pattern.permute.xlu0 0
          %504 = vperm.xlu0 %503, %v502
          %v505 = vpop.permute.xlu0 %504
          %507 = vst [vmem:[%s277] sm:$0xff] %v505
        $region56: #{tpu_custom_call.1} parent=35 // pred_fallthru
          _
        %s508 = sand.u32 %s153, 1
        %s509 = scalar_lea.sflag [#allocation7], %s508
        %s510 = sand.u32 %s153, 1
        %s511 = smul.addr %s510, 8
        %s512 = scalar_lea.vmem [#allocation8], %s511
        // Predicated region
        $region57: #{tpu_custom_call.1} parent=35 // pred_check
          %p513 = pneg %p163
        $region58: #{tpu_custom_call.1} parent=35 // pred_check_branch
          %515 = sbr.rel (%p513) target = $region60
        $region59: #{tpu_custom_call.1} parent=35 // pred_region
          %s517 = ssub.s32 128, 128
          %518 = vsyncadd %s509, %s517
          %s519 = smul.addr %s26, 128
          %s520 = scalar_lea.hbm %s5, %s519
          %s522 = sshll.u32 %s512, 4
          %s523 = int_to_ptr.vmem [resolvable:$true] %s522
          %525 = dma.vmem_to_hbm [thread:$0]  %s523, 128, %s520, %s509
        $region60: #{tpu_custom_call.1} parent=35 // pred_fallthru
          _
      $region36: #{tpu_custom_call.1} parent=5 // pred_fallthru
        _
      %p526 = scmp.le.s32.totalorder 2, %s17
      // Predicated region
      $region61: #{tpu_custom_call.1} parent=5 // pred_check
        %p527 = pneg %p526
      $region62: #{tpu_custom_call.1} parent=5 // pred_check_branch
        %529 = sbr.rel (%p527) target = $region64
      $region63: #{tpu_custom_call.1} parent=5 // pred_region
        %s530 = ssub.s32 %s17, 2
        // Predicated region
        $region65: #{tpu_custom_call.1} parent=63 // pred_check
          %p531 = pneg %p169
        $region66: #{tpu_custom_call.1} parent=63 // pred_check_branch
          %533 = sbr.rel (%p531) target = $region68
        $region67: #{tpu_custom_call.1} parent=63 // pred_region
          %s534 = sand.u32 %s154, 1
          %s535 = scalar_lea.sflag [#allocation7], %s534
          %s536 = sand.u32 %s154, 1
          %s537 = smul.addr %s536, 8
          %s538 = scalar_lea.vmem [#allocation8], %s537
          %539 = dma.done %s535, 128
        $region68: #{tpu_custom_call.1} parent=63 // pred_fallthru
          _
      $region64: #{tpu_custom_call.1} parent=5 // pred_fallthru
        _
    $region6: #{tpu_custom_call.1} parent=1 // loop_footer
      %s21 = sadd.s32 1, %s17
    $region7: #{tpu_custom_call.1} parent=1 // loop_footer_branch
      %16 = sbr.rel target = $region3
    $region8: #{tpu_custom_call.1} parent=1 // loop_exit
      _
    %540 = vsyncpa [#allocation6], 1
    %s541 = scalar_lea.sflag [#allocation6], 1
    %542 = vsyncpa %s541, 1
    %543 = vsyncpa [#allocation7], 1
    %s544 = scalar_lea.sflag [#allocation7], 1
    %545 = vsyncpa %s544, 1
  %546 = vsyncmov [#allocation3]
  %s547 = vpop.sfrf %546
  %p548 = scmp.eq.s32.totalorder %s547, 0
  %p549 = pneg %p548
  %551 = shalt.err (%p549)

</llo_original>
